<compile_context>
chip_gen: v7x
topology: tpu7x:2x2x1
jax: 0.10.0
libtpu: 0.0.40
codegen_flags: <defaults>
</compile_context>

<pallas_src>
import jax
import jax.numpy as jnp
from jax.experimental import pallas as pl
from jax.experimental.pallas import tpu as pltpu

_LANE = 128
_TARGET_BLOCK_BYTES = 2 * 1024 * 1024  # per-block budget; 2x in + 2x out stays
                                       # well under the v7x 32 MiB scoped VMEM.


def _round_up(v, m):
    return -(-v // m) * m


# --------------------------------------------------------------------------
# Pass 1: per-(batch, channel) f32 sums over the spatial axis (reduction).
# --------------------------------------------------------------------------
def _sum_kernel(x_ref, sum_ref):
    # x_ref:   (TB, C, TS) tile of the flattened input
    # sum_ref: (TB, C, 1)  f32 accumulator, resident across the spatial axis
    @pl.when(pl.program_id(1) == 0)
    def _init():
        sum_ref[...] = jnp.zeros_like(sum_ref)

    # f32 accumulation without materializing an f32 copy of the whole block.
    sum_ref[...] += jnp.sum(x_ref[...], axis=-1, keepdims=True,
                            dtype=jnp.float32)


# --------------------------------------------------------------------------
# Pass 2: stream x and rescale each channel by its precomputed gate.
# --------------------------------------------------------------------------
def _scale_kernel(gate_ref, x_ref, o_ref):
    # gate_ref: (TB, C, 1) already in x's dtype (bf16-native multiply on v6e/v7x)
    # x_ref:    (TB, C, TS)
    o_ref[...] = x_ref[...] * gate_ref[...]


def _choose_tiles(N, C, S, itemsize):
    """Pick a lane-dense spatial tile and (for small problems) a batch tile."""
    s_pad = _round_up(S, _LANE)
    ts_cap = max(_LANE,
                 (_TARGET_BLOCK_BYTES // max(1, C * itemsize)) // _LANE * _LANE)
    ts_cap = min(ts_cap, s_pad)
    n_tiles = -(-s_pad // ts_cap)
    ts = _round_up(-(-s_pad // n_tiles), _LANE)
    s_total = n_tiles * ts

    # If the whole spatial extent fits one tile, fold batch into the block so
    # tiny problems run in 1-2 grid steps per pass.
    tb = 1
    if n_tiles == 1:
        blk_bytes = C * s_total * itemsize
        cap = max(1, _TARGET_BLOCK_BYTES // max(1, blk_bytes))
        for cand in range(min(N, cap), 0, -1):
            if N % cand == 0:
                tb = cand
                break
    return tb, ts, n_tiles, s_total


def ca_layer(x, w1, w2):
    """Channel attention. x: (N, C, D, H, W); w1: (C_red, C); w2: (C, C_red)."""
    N, C, D, H, W = x.shape
    S = D * H * W
    itemsize = jnp.dtype(x.dtype).itemsize

    TB, TS, n_tiles, S_pad = _choose_tiles(N, C, S, itemsize)
    NB = N // TB

    x_flat = x.reshape(N, C, S)
    if S_pad != S:
        # Zero padding does not perturb the sums; padded lanes are sliced off
        # from the output below.
        x_flat = jnp.pad(x_flat, ((0, 0), (0, 0), (0, S_pad - S)))

    # ---- pass 1: per-channel sums (spatial axis is the reduction) ---------
    sums = pl.pallas_call(
        _sum_kernel,
        out_shape=jax.ShapeDtypeStruct((N, C, 1), jnp.float32),
        grid=(NB, n_tiles),
        in_specs=[pl.BlockSpec((TB, C, TS), lambda b, s: (b, 0, s))],
        out_specs=pl.BlockSpec((TB, C, 1), lambda b, s: (b, 0, 0)),
        compiler_params=pltpu.CompilerParams(
            dimension_semantics=("parallel", "arbitrary")),
        cost_estimate=pl.CostEstimate(
            flops=N * C * S_pad,
            transcendentals=0,
            bytes_accessed=N * C * S_pad * itemsize + N * C * 4),
    )(x_flat)

    # ---- tiny gate MLP on (N, C) means: hoisted out of the streaming loop --
    mean = sums[:, :, 0] * jnp.float32(1.0 / S)                    # (N, C)
    hidden = jax.nn.relu(mean @ w1.astype(jnp.float32).T)          # (N, C_red)
    gate = jax.nn.sigmoid(hidden @ w2.astype(jnp.float32).T)       # (N, C)
    gate = gate.astype(x.dtype)[:, :, None]                        # (N, C, 1)

    # ---- pass 2: stream x, multiply by the per-channel gate ---------------
    out_flat = pl.pallas_call(
        _scale_kernel,
        out_shape=jax.ShapeDtypeStruct((N, C, S_pad), x.dtype),
        grid=(NB, n_tiles),
        in_specs=[
            pl.BlockSpec((TB, C, 1), lambda b, s: (b, 0, 0)),
            pl.BlockSpec((TB, C, TS), lambda b, s: (b, 0, s)),
        ],
        out_specs=pl.BlockSpec((TB, C, TS), lambda b, s: (b, 0, s)),
        compiler_params=pltpu.CompilerParams(
            dimension_semantics=("parallel", "parallel")),
        cost_estimate=pl.CostEstimate(
            flops=N * C * S_pad,
            transcendentals=0,
            bytes_accessed=2 * N * C * S_pad * itemsize + N * C * itemsize),
    )(gate, x_flat)

    return out_flat[:, :, :S].reshape(N, C, D, H, W)


def ca_layer_ref(x, w1, w2):
    """Pure-JAX reference mirroring the PyTorch forward."""
    y = jnp.mean(x, axis=(2, 3, 4), keepdims=True)          # (N, C, 1, 1, 1)
    y = jnp.einsum("oc,ncdhw->nodhw", w1, y)                 # conv3d 1x1x1, no bias
    y = jax.nn.relu(y)
    y = jnp.einsum("oc,ncdhw->nodhw", w2, y)
    y = jax.nn.sigmoid(y)
    return x * y


if __name__ == "__main__":
    # Module config: channel=32, reduction=16 -> hidden = 2
    N, C, D, H, W = 2, 32, 4, 8, 8
    reduction = 16
    C_red = C // reduction

    key = jax.random.PRNGKey(0)
    kx, k1, k2 = jax.random.split(key, 3)

    x = jax.random.normal(kx, (N, C, D, H, W), dtype=jnp.float32)
    # Conv3d weights (out, in, 1, 1, 1) squeezed to (out, in)
    w1 = jax.random.normal(k1, (C_red, C), dtype=jnp.float32) * 0.1
    w2 = jax.random.normal(k2, (C, C_red), dtype=jnp.float32) * 0.1

    out = jax.block_until_ready(ca_layer(x, w1, w2))
    ref = ca_layer_ref(x, w1, w2)

    assert out.shape == (N, C, D, H, W)
    assert jnp.allclose(out, ref, atol=1e-5, rtol=1e-5), "mismatch vs reference"

    print("KERNEL_OK")
</pallas_src>

<mosaic_0001>
module attributes {stable_mosaic.version = 11 : i64} {
  func.func @_sum_kernel(%arg0: i32, %arg1: i32, %arg2: memref<2x32x256xf32, #tpu.memory_space<vmem>>, %arg3: memref<2x32x1xf32, #tpu.memory_space<vmem>>) attributes {dimension_semantics = [#tpu.dimension_semantics<parallel>, #tpu.dimension_semantics<arbitrary>], iteration_bounds = array<i64: 1, 1>, scalar_prefetch = 0 : i64, scratch_operands = 0 : i64, tpu.core_type = #tpu.core_type<tc>, window_params = [{transform_indices = @transform_0, window_bounds = array<i64: 2, 32, 256>}, {transform_indices = @transform_1, window_bounds = array<i64: 2, 32, 1>}]} {
    %c0_i32 = arith.constant 0 : i32
    %0 = arith.cmpi eq, %arg1, %c0_i32 : i32
    %1 = arith.extui %0 : i1 to i32
    %c0_i32_0 = arith.constant 0 : i32
    %2 = arith.cmpi ne, %1, %c0_i32_0 : i32
    scf.if %2 {
      %cst_9 = arith.constant 0.000000e+00 : f32
      %9 = vector.broadcast %cst_9 : f32 to vector<2x32x1xf32>
      %c0_10 = arith.constant 0 : index
      %c0_11 = arith.constant 0 : index
      %c0_12 = arith.constant 0 : index
      %10 = vector.load %arg3[%c0_10, %c0_11, %c0_12] : memref<2x32x1xf32, #tpu.memory_space<vmem>>, vector<2x32x1xf32>
      tpu.vector_store %arg3[%c0_10, %c0_11, %c0_12], %9 {strides = array<i32>} : memref<2x32x1xf32, #tpu.memory_space<vmem>>, vector<2x32x1xf32>,
    } else {
    }
    %c0 = arith.constant 0 : index
    %c0_1 = arith.constant 0 : index
    %c0_2 = arith.constant 0 : index
    %3 = vector.load %arg3[%c0, %c0_1, %c0_2] : memref<2x32x1xf32, #tpu.memory_space<vmem>>, vector<2x32x1xf32>
    %c0_3 = arith.constant 0 : index
    %c0_4 = arith.constant 0 : index
    %c0_5 = arith.constant 0 : index
    %4 = vector.load %arg2[%c0_3, %c0_4, %c0_5] : memref<2x32x256xf32, #tpu.memory_space<vmem>>, vector<2x32x256xf32>
    %cst = arith.constant dense<0.000000e+00> : vector<2x32xf32>
    %5 = vector.multi_reduction <add>, %4, %cst [2] : vector<2x32x256xf32> to vector<2x32xf32>
    %6 = vector.shape_cast %5 : vector<2x32xf32> to vector<2x32x1xf32>
    %7 = arith.addf %3, %6 : vector<2x32x1xf32>
    %c0_6 = arith.constant 0 : index
    %c0_7 = arith.constant 0 : index
    %c0_8 = arith.constant 0 : index
    %8 = vector.load %arg3[%c0_6, %c0_7, %c0_8] : memref<2x32x1xf32, #tpu.memory_space<vmem>>, vector<2x32x1xf32>
    tpu.vector_store %arg3[%c0_6, %c0_7, %c0_8], %7 {strides = array<i32>} : memref<2x32x1xf32, #tpu.memory_space<vmem>>, vector<2x32x1xf32>,
    return
  }
  func.func @transform_0(%arg0: i32, %arg1: i32) -> (i32, i32, i32) {
    %c0_i32 = arith.constant 0 : i32
    %c0_i32_0 = arith.constant 0 : i32
    return %arg0, %c0_i32, %arg1 : i32, i32, i32
  }
  func.func @transform_1(%arg0: i32, %arg1: i32) -> (i32, i32, i32) {
    %c0_i32 = arith.constant 0 : i32
    %c0_i32_0 = arith.constant 0 : i32
    %c0_i32_1 = arith.constant 0 : i32
    return %arg0, %c0_i32, %c0_i32_0 : i32, i32, i32
  }
}

</mosaic_0001>

<llo_original>
// kernel: tpu_custom_call.1
$region0: #{tpu_custom_call.1}
  #allocation0 [shape = 'u32[]', space=smem, size = 0x4, offset = 0x4, fixed_abs, tag = 'smem constant byte address 0x4 - core index']
  #allocation1 [shape = 'u32[144,128]{1,0:T(1,128)}', space=vmem, size = 0x12000, scoped, tag = 'internal scratch']
  %s0 = inlined_call_operand.hbm [shape: f32[2,32,256], index: 0, kind: input, shape index: {}]
  %s1 = inlined_call_operand.vmem [shape: f32[2,32,1], index: 1, kind: output, shape index: {}]
  %s2 = sld [smem:[#allocation0]]
  $region22: #{tpu_custom_call.1} parent=0
    _
  %s4 = ssub.s32 1, %s2
  %s5 = scalar_select 0, %s4, %s2
  $region1: #{tpu_custom_call.1} parent=0
    #allocation2 [shape = 'u8[65536]{0}', space=vmem, size = 0x10000, scoped, tag = 'input window, operand 0, single buffered']
    #allocation3 [shape = 's32[1]{0}', space=sflag, size = 0x4, scoped, tag = 'scoped memory for tpu_custom_call.1']
    %6 = vsyncpa [#allocation3], 0
    // Predicated region
    $region2: #{tpu_custom_call.1} parent=1 // pred_check
      _
    $region3: #{tpu_custom_call.1} parent=1 // pred_check_branch
      %8 = sbr.rel (0) target = $region5
    $region4: #{tpu_custom_call.1} parent=1 // pred_region
      %s10 = ssub.s32 2048, 2048
      %11 = vsyncadd [#allocation3], %s10
      %s12 = sshll.u32 [#allocation2], 4
      %s13 = int_to_ptr.vmem [resolvable:$true] %s12
      %18 = dma.hbm_to_vmem [thread:$0]  %s0, 2048, %s13, [#allocation3], 256, 256, 16
    $region5: #{tpu_custom_call.1} parent=1 // pred_fallthru
      _
    // Predicated region
    $region6: #{tpu_custom_call.1} parent=1 // pred_check
      _
    $region7: #{tpu_custom_call.1} parent=1 // pred_check_branch
      %20 = sbr.rel (0) target = $region9
    $region8: #{tpu_custom_call.1} parent=1 // pred_region
      %21 = dma.done [#allocation3], 2048
    $region9: #{tpu_custom_call.1} parent=1 // pred_fallthru
      _
    %p22 = scmp.eq.s32.totalorder 0, 0
    // Predicated region
    $region10: #{tpu_custom_call.1} parent=1 // pred_check
      %p23 = pneg %p22
    $region11: #{tpu_custom_call.1} parent=1 // pred_check_branch
      %25 = sbr.rel (%p23) target = $region13
    $region12: #{tpu_custom_call.1} parent=1 // pred_region
      %vm26 = vcmask 7168
      %27 = vst.msk [vmem:[%s1] sm:$0xff] %vm26, 0.0
      %28 = vst.msk [vmem:[%s1 + $0x8] sm:$0xff] %vm26, 0.0
      %29 = vst.msk [vmem:[%s1 + $0x10] sm:$0xff] %vm26, 0.0
      %30 = vst.msk [vmem:[%s1 + $0x18] sm:$0xff] %vm26, 0.0
      %31 = vst.msk [vmem:[%s1 + $0x20] sm:$0xff] %vm26, 0.0
      %32 = vst.msk [vmem:[%s1 + $0x28] sm:$0xff] %vm26, 0.0
      %33 = vst.msk [vmem:[%s1 + $0x30] sm:$0xff] %vm26, 0.0
      %34 = vst.msk [vmem:[%s1 + $0x38] sm:$0xff] %vm26, 0.0
    $region13: #{tpu_custom_call.1} parent=1 // pred_fallthru
      _
    %v35 = vld [vmem:[%s1] sm:$0xff]
    %v36 = vld [vmem:[%s1 + $0x8] sm:$0xff]
    %v37 = vld [vmem:[%s1 + $0x10] sm:$0xff]
    %v38 = vld [vmem:[%s1 + $0x18] sm:$0xff]
    %v39 = vld [vmem:[%s1 + $0x20] sm:$0xff]
    %v40 = vld [vmem:[%s1 + $0x28] sm:$0xff]
    %v41 = vld [vmem:[%s1 + $0x30] sm:$0xff]
    %v42 = vld [vmem:[%s1 + $0x38] sm:$0xff]
    %v43 = vld [vmem:[#allocation2] sm:$0xff]
    %v44 = vld [vmem:[#allocation2 + $0x8] sm:$0xff]
    %v45 = vld [vmem:[#allocation2 + $0x10] sm:$0xff]
    %v46 = vld [vmem:[#allocation2 + $0x18] sm:$0xff]
    %v47 = vld [vmem:[#allocation2 + $0x20] sm:$0xff]
    %v48 = vld [vmem:[#allocation2 + $0x28] sm:$0xff]
    %v49 = vld [vmem:[#allocation2 + $0x30] sm:$0xff]
    %v50 = vld [vmem:[#allocation2 + $0x38] sm:$0xff]
    %v51 = vld [vmem:[#allocation2 + $0x40] sm:$0xff]
    %v52 = vld [vmem:[#allocation2 + $0x48] sm:$0xff]
    %v53 = vld [vmem:[#allocation2 + $0x50] sm:$0xff]
    %v54 = vld [vmem:[#allocation2 + $0x58] sm:$0xff]
    %v55 = vld [vmem:[#allocation2 + $0x60] sm:$0xff]
    %v56 = vld [vmem:[#allocation2 + $0x68] sm:$0xff]
    %v57 = vld [vmem:[#allocation2 + $0x70] sm:$0xff]
    %v58 = vld [vmem:[#allocation2 + $0x78] sm:$0xff]
    %v59 = vadd.f32 %v43, %v44
    %60 = vadd.xlane.f32.xlu0 %v59
    %v61 = vpop.xlane.xlu0 %60
    %v62 = vadd.f32 %v45, %v46
    %63 = vadd.xlane.f32.xlu0 %v62
    %v64 = vpop.xlane.xlu0 %63
    %v65 = vadd.f32 %v47, %v48
    %66 = vadd.xlane.f32.xlu0 %v65
    %v67 = vpop.xlane.xlu0 %66
    %v68 = vadd.f32 %v49, %v50
    %69 = vadd.xlane.f32.xlu0 %v68
    %v70 = vpop.xlane.xlu0 %69
    %v71 = vadd.f32 %v51, %v52
    %72 = vadd.xlane.f32.xlu0 %v71
    %v73 = vpop.xlane.xlu0 %72
    %v74 = vadd.f32 %v53, %v54
    %75 = vadd.xlane.f32.xlu0 %v74
    %v76 = vpop.xlane.xlu0 %75
    %v77 = vadd.f32 %v55, %v56
    %78 = vadd.xlane.f32.xlu0 %v77
    %v79 = vpop.xlane.xlu0 %78
    %v80 = vadd.f32 %v57, %v58
    %81 = vadd.xlane.f32.xlu0 %v80
    %v82 = vpop.xlane.xlu0 %81
    %v83 = vadd.f32 %v35, %v61
    %v84 = vadd.f32 %v36, %v64
    %v85 = vadd.f32 %v37, %v67
    %v86 = vadd.f32 %v38, %v70
    %v87 = vadd.f32 %v39, %v73
    %v88 = vadd.f32 %v40, %v76
    %v89 = vadd.f32 %v41, %v79
    %v90 = vadd.f32 %v42, %v82
    %vm91 = vcmask 7168
    %92 = vst.msk [vmem:[%s1] sm:$0xff] %vm91, %v83
    %93 = vst.msk [vmem:[%s1 + $0x8] sm:$0xff] %vm91, %v84
    %94 = vst.msk [vmem:[%s1 + $0x10] sm:$0xff] %vm91, %v85
    %95 = vst.msk [vmem:[%s1 + $0x18] sm:$0xff] %vm91, %v86
    %96 = vst.msk [vmem:[%s1 + $0x20] sm:$0xff] %vm91, %v87
    %97 = vst.msk [vmem:[%s1 + $0x28] sm:$0xff] %vm91, %v88
    %98 = vst.msk [vmem:[%s1 + $0x30] sm:$0xff] %vm91, %v89
    %99 = vst.msk [vmem:[%s1 + $0x38] sm:$0xff] %vm91, %v90
    // Predicated region
    $region14: #{tpu_custom_call.1} parent=1 // pred_check
      _
    $region15: #{tpu_custom_call.1} parent=1 // pred_check_branch
      %101 = sbr.rel (0) target = $region17
    $region16: #{tpu_custom_call.1} parent=1 // pred_region
      _
    $region17: #{tpu_custom_call.1} parent=1 // pred_fallthru
      _
    // Predicated region
    $region18: #{tpu_custom_call.1} parent=1 // pred_check
      _
    $region19: #{tpu_custom_call.1} parent=1 // pred_check_branch
      %103 = sbr.rel (0) target = $region21
    $region20: #{tpu_custom_call.1} parent=1 // pred_region
      _
    $region21: #{tpu_custom_call.1} parent=1 // pred_fallthru
      _
    %104 = vsyncpa [#allocation3], 1

</llo_original>
